<compile_context>
chip_gen: v5e
topology: v5e:2x2
jax: 0.10.0
libtpu: 0.0.40
codegen_flags: <defaults>
</compile_context>

<pallas_src>
import functools

import jax
import jax.numpy as jnp
from jax.experimental import pallas as pl
from jax.experimental.pallas import tpu as pltpu

_EPS = 1e-5
_TARGET_BLOCK_BYTES = 2 << 20  # ~2 MiB input block -> ~8 MiB double-buffered


def _choose_tile(total, bytes_per_unit, align, target_bytes=_TARGET_BLOCK_BYTES):
    """Tile length along the pipelined axis: either the full extent or a
    multiple of `align`, sized so one input block is ~target_bytes."""
    total = int(total)
    if total <= align:
        return total
    max_units = max(align,
                    (target_bytes // max(int(bytes_per_unit), 1)) // align * align)
    tile = min(max_units, -(-total // align) * align)
    return total if tile >= total else int(tile)


# ----------------------------------------------------------------------------
# Kernels
# ----------------------------------------------------------------------------
def _stats3d_kernel(x_ref, sum_ref, sq_ref, *, total, block):
    """x_ref: (B, C, TS). Accumulate per-channel sum / sumsq into (C, 1) f32."""
    pid = pl.program_id(0)

    @pl.when(pid == 0)
    def _init():
        sum_ref[...] = jnp.zeros_like(sum_ref)
        sq_ref[...] = jnp.zeros_like(sq_ref)

    xf = x_ref[...].astype(jnp.float32)
    if total % block != 0:  # mask the OOB tail of the last partial block
        lane = jax.lax.broadcasted_iota(jnp.int32, xf.shape, 2)
        xf = jnp.where(pid * block + lane < total, xf, 0.0)

    s = jnp.sum(xf, axis=0)                               # (C, TS)
    q = jnp.sum(xf * xf, axis=0)                          # (C, TS)
    sum_ref[...] += jnp.sum(s, axis=1, keepdims=True)     # (C, 1)
    sq_ref[...] += jnp.sum(q, axis=1, keepdims=True)      # (C, 1)


def _norm3d_kernel(x_ref, scale_ref, shift_ref, out_ref):
    """out = x * scale + shift; x: (B, C, TS), scale/shift: (C, 1) f32."""
    scale = scale_ref[...][None, :, :]                    # (1, C, 1)
    shift = shift_ref[...][None, :, :]
    out_ref[...] = (x_ref[...].astype(jnp.float32) * scale
                    + shift).astype(out_ref.dtype)


def _stats2d_kernel(x_ref, sum_ref, sq_ref, *, total, block):
    """x_ref: (TM, C). Accumulate per-channel sum / sumsq into (1, C) f32."""
    pid = pl.program_id(0)

    @pl.when(pid == 0)
    def _init():
        sum_ref[...] = jnp.zeros_like(sum_ref)
        sq_ref[...] = jnp.zeros_like(sq_ref)

    xf = x_ref[...].astype(jnp.float32)
    if total % block != 0:
        row = jax.lax.broadcasted_iota(jnp.int32, xf.shape, 0)
        xf = jnp.where(pid * block + row < total, xf, 0.0)

    sum_ref[...] += jnp.sum(xf, axis=0, keepdims=True)
    sq_ref[...] += jnp.sum(xf * xf, axis=0, keepdims=True)


def _norm2d_kernel(x_ref, scale_ref, shift_ref, out_ref):
    """out = x * scale + shift; x: (TM, C), scale/shift: (1, C) f32."""
    out_ref[...] = (x_ref[...].astype(jnp.float32) * scale_ref[...]
                    + shift_ref[...]).astype(out_ref.dtype)


# ----------------------------------------------------------------------------
# pallas_call wrappers (1-D grid over the pipelined axis)
# ----------------------------------------------------------------------------
@functools.partial(jax.jit, static_argnames=("block",))
def _stats_3d(x3, *, block):
    b, c, s = x3.shape
    kernel = functools.partial(_stats3d_kernel, total=s, block=block)
    return pl.pallas_call(
        kernel,
        grid=(pl.cdiv(s, block),),
        in_specs=[pl.BlockSpec((b, c, block), lambda i: (0, 0, i))],
        out_specs=(pl.BlockSpec((c, 1), lambda i: (0, 0)),
                   pl.BlockSpec((c, 1), lambda i: (0, 0))),
        out_shape=(jax.ShapeDtypeStruct((c, 1), jnp.float32),
                   jax.ShapeDtypeStruct((c, 1), jnp.float32)),
        compiler_params=pltpu.CompilerParams(dimension_semantics=("arbitrary",)),
    )(x3)


@functools.partial(jax.jit, static_argnames=("block",))
def _normalize_3d(x3, scale, shift, *, block):
    b, c, s = x3.shape
    return pl.pallas_call(
        _norm3d_kernel,
        grid=(pl.cdiv(s, block),),
        in_specs=[pl.BlockSpec((b, c, block), lambda i: (0, 0, i)),
                  pl.BlockSpec((c, 1), lambda i: (0, 0)),
                  pl.BlockSpec((c, 1), lambda i: (0, 0))],
        out_specs=pl.BlockSpec((b, c, block), lambda i: (0, 0, i)),
        out_shape=jax.ShapeDtypeStruct((b, c, s), x3.dtype),
        compiler_params=pltpu.CompilerParams(dimension_semantics=("parallel",)),
    )(x3, scale, shift)


@functools.partial(jax.jit, static_argnames=("block",))
def _stats_2d(x2, *, block):
    m, c = x2.shape
    kernel = functools.partial(_stats2d_kernel, total=m, block=block)
    return pl.pallas_call(
        kernel,
        grid=(pl.cdiv(m, block),),
        in_specs=[pl.BlockSpec((block, c), lambda i: (i, 0))],
        out_specs=(pl.BlockSpec((1, c), lambda i: (0, 0)),
                   pl.BlockSpec((1, c), lambda i: (0, 0))),
        out_shape=(jax.ShapeDtypeStruct((1, c), jnp.float32),
                   jax.ShapeDtypeStruct((1, c), jnp.float32)),
        compiler_params=pltpu.CompilerParams(dimension_semantics=("arbitrary",)),
    )(x2)


@functools.partial(jax.jit, static_argnames=("block",))
def _normalize_2d(x2, scale, shift, *, block):
    m, c = x2.shape
    return pl.pallas_call(
        _norm2d_kernel,
        grid=(pl.cdiv(m, block),),
        in_specs=[pl.BlockSpec((block, c), lambda i: (i, 0)),
                  pl.BlockSpec((1, c), lambda i: (0, 0)),
                  pl.BlockSpec((1, c), lambda i: (0, 0))],
        out_specs=pl.BlockSpec((block, c), lambda i: (i, 0)),
        out_shape=jax.ShapeDtypeStruct((m, c), x2.dtype),
        compiler_params=pltpu.CompilerParams(dimension_semantics=("parallel",)),
    )(x2, scale, shift)


# ----------------------------------------------------------------------------
# Module-equivalent wrapper
# ----------------------------------------------------------------------------
class BatchNorm:
    """JAX/Pallas port of the PyTorch BatchNorm module (forward pass)."""

    def __init__(self, size, batch_dims=()):
        ndim = len(batch_dims) + 1
        shape = tuple(size if d not in batch_dims else 1 for d in range(ndim))
        # reset_parameters(): beta=0, gamma=1, running_mean=0, running_var=1
        self.beta = jnp.zeros(shape, jnp.float32)
        self.gamma = jnp.ones(shape, jnp.float32)
        self.running_mean = jnp.zeros(shape, jnp.float32)
        self.running_var = jnp.ones(shape, jnp.float32)
        self.decay = 0.9
        self.size = size
        self.dims = tuple(batch_dims)
        self.ndim = ndim
        self.ch_dim = [d for d in range(ndim) if d not in self.dims][0]

    def forward(self, x, training=True):
        # torch.is_grad_enabled() is replaced by the explicit `training` flag.
        assert x.ndim == self.ndim, (
            f"Expect tensor with {self.ndim} axes, but got {x.shape}")
        c = self.size
        count = 1
        for d in self.dims:
            count *= int(x.shape[d])
        itemsize = jnp.dtype(x.dtype).itemsize

        channels_last = (self.ch_dim == self.ndim - 1)
        if channels_last:
            xv = x.reshape(-1, c)                  # (M, C), free reshape
            blk = _choose_tile(xv.shape[0], c * itemsize, align=8)
        else:
            lead = 1
            for d in range(self.ch_dim):
                lead *= int(x.shape[d])
            xv = x.reshape(lead, c, -1)            # (B, C, S), free reshape
            blk = _choose_tile(xv.shape[2], lead * c * itemsize, align=128)
            # TODO(synk): extremely large B*C (block too tall even at TS=128)
            # would additionally need tiling over the leading axis.

        g = self.gamma.reshape(c).astype(jnp.float32)
        b = self.beta.reshape(c).astype(jnp.float32)

        if training:
            if channels_last:
                ssum, ssq = _stats_2d(xv, block=blk)
            else:
                ssum, ssq = _stats_3d(xv, block=blk)
            ssum = ssum.reshape(c)
            ssq = ssq.reshape(c)
            mean = ssum / count
            var = jnp.maximum(ssq / count - mean * mean, 0.0)    # correction=0
            # TODO(synk): PyTorch gives NaN running_var when count == 1 (0/0);
            # we guard the denominator instead.
            var_unbiased = var * (count / max(count - 1, 1))     # correction=1
            pshape = self.running_mean.shape
            self.running_mean = (self.decay * self.running_mean
                                 + (1.0 - self.decay) * mean.reshape(pshape))
            self.running_var = (self.decay * self.running_var
                                + (1.0 - self.decay) * var_unbiased.reshape(pshape))
        else:
            mean = self.running_mean.reshape(c).astype(jnp.float32)
            var = self.running_var.reshape(c).astype(jnp.float32)

        # Fused per-channel affine: y = x * scale + shift (2 VPU ops / element)
        inv_std = jax.lax.rsqrt(var + _EPS)
        scale = g * inv_std
        shift = b - mean * scale

        if channels_last:
            y = _normalize_2d(xv, scale.reshape(1, c), shift.reshape(1, c),
                              block=blk)
        else:
            y = _normalize_3d(xv, scale.reshape(c, 1), shift.reshape(c, 1),
                              block=blk)
        return y.reshape(x.shape)


# ----------------------------------------------------------------------------
# Pure-JAX reference (mirrors the PyTorch forward exactly)
# ----------------------------------------------------------------------------
def _reference_forward(x, gamma, beta, dims):
    mu = jnp.mean(x, axis=dims, keepdims=True)
    var = jnp.var(x, axis=dims, ddof=0, keepdims=True)
    xn = (x - mu) / jnp.sqrt(var + _EPS)
    return gamma * xn + beta


if __name__ == "__main__":
    key = jax.random.PRNGKey(0)

    # -- main case: NCHW conv feature map, batch_dims=(0, 2, 3) -----------------
    N, C, H, W = 2, 4, 16, 16
    x = jax.random.normal(key, (N, C, H, W), dtype=jnp.float32) * 2.0 + 0.5

    bn = BatchNorm(size=C, batch_dims=(0, 2, 3))
    y = jax.block_until_ready(bn.forward(x, training=True))

    y_ref = _reference_forward(x, bn.gamma, bn.beta, dims=(0, 2, 3))
    assert y.shape == x.shape and y.dtype == x.dtype
    assert jnp.allclose(y, y_ref, atol=1e-4, rtol=1e-4), "train mismatch"

    mu_ref = jnp.mean(x, axis=(0, 2, 3), keepdims=True)
    varu_ref = jnp.var(x, axis=(0, 2, 3), ddof=1, keepdims=True)
    assert jnp.allclose(bn.running_mean, 0.1 * mu_ref, atol=1e-4)
    assert jnp.allclose(bn.running_var, 0.9 + 0.1 * varu_ref, atol=1e-4)

    # inference path uses running stats via the fused-affine normalize kernel
    y_eval = jax.block_until_ready(bn.forward(x, training=False))
    y_eval_ref = (bn.gamma * (x - bn.running_mean)
                  / jnp.sqrt(bn.running_var + _EPS) + bn.beta)
    assert jnp.allclose(y_eval, y_eval_ref, atol=1e-4, rtol=1e-4), "eval mismatch"

    # -- multi-block + masked-tail case (grid > 1, S % block != 0) --------------
    x_big = jax.random.normal(jax.random.PRNGKey(1), (4, 64, 63, 63),
                              dtype=jnp.float32) + 1.5
    bn_big = BatchNorm(size=64, batch_dims=(0, 2, 3))
    y_big = jax.block_until_ready(bn_big.forward(x_big, training=True))
    y_big_ref = _reference_forward(x_big, bn_big.gamma, bn_big.beta,
                                   dims=(0, 2, 3))
    assert jnp.allclose(y_big, y_big_ref, atol=5e-4, rtol=5e-4), "tiled mismatch"

    # -- channels-last case: (batch, features), batch_dims=(0,) -----------------
    x_fc = jax.random.normal(jax.random.PRNGKey(2), (200, 32),
                             dtype=jnp.float32) * 0.7 - 0.3
    bn_fc = BatchNorm(size=32, batch_dims=(0,))
    y_fc = jax.block_until_ready(bn_fc.forward(x_fc, training=True))
    y_fc_ref = _reference_forward(x_fc, bn_fc.gamma, bn_fc.beta, dims=(0,))
    assert jnp.allclose(y_fc, y_fc_ref, atol=1e-4, rtol=1e-4), "2d mismatch"

    print("KERNEL_OK")
</pallas_src>

<mosaic_0001>
module attributes {stable_mosaic.version = 11 : i64} {
  func.func @_stats3d_kernel(%arg0: i32, %arg1: memref<2x4x256xf32, #tpu.memory_space<vmem>>, %arg2: memref<4x1xf32, #tpu.memory_space<vmem>>, %arg3: memref<4x1xf32, #tpu.memory_space<vmem>>) attributes {dimension_semantics = [#tpu.dimension_semantics<arbitrary>], iteration_bounds = array<i64: 1>, scalar_prefetch = 0 : i64, scratch_operands = 0 : i64, tpu.core_type = #tpu.core_type<tc>, window_params = [{transform_indices = @transform_0, window_bounds = array<i64: 2, 4, 256>}, {pipeline_mode = #tpu.pipeline_mode<synchronous>, transform_indices = @transform_1, window_bounds = array<i64: 4, 1>}, {pipeline_mode = #tpu.pipeline_mode<synchronous>, transform_indices = @transform_2, window_bounds = array<i64: 4, 1>}]} {
    %c0_i32 = arith.constant 0 : i32
    %0 = arith.cmpi eq, %arg0, %c0_i32 : i32
    %1 = arith.extui %0 : i1 to i32
    %c0_i32_0 = arith.constant 0 : i32
    %2 = arith.cmpi ne, %1, %c0_i32_0 : i32
    scf.if %2 {
      %cst_14 = arith.constant 0.000000e+00 : f32
      %17 = vector.broadcast %cst_14 : f32 to vector<4x1xf32>
      %c0_15 = arith.constant 0 : index
      %c0_16 = arith.constant 0 : index
      %18 = vector.load %arg2[%c0_15, %c0_16] : memref<4x1xf32, #tpu.memory_space<vmem>>, vector<4x1xf32>
      tpu.vector_store %arg2[%c0_15, %c0_16], %17 {strides = array<i32>} : memref<4x1xf32, #tpu.memory_space<vmem>>, vector<4x1xf32>,
      %cst_17 = arith.constant 0.000000e+00 : f32
      %19 = vector.broadcast %cst_17 : f32 to vector<4x1xf32>
      %c0_18 = arith.constant 0 : index
      %c0_19 = arith.constant 0 : index
      %20 = vector.load %arg3[%c0_18, %c0_19] : memref<4x1xf32, #tpu.memory_space<vmem>>, vector<4x1xf32>
      tpu.vector_store %arg3[%c0_18, %c0_19], %19 {strides = array<i32>} : memref<4x1xf32, #tpu.memory_space<vmem>>, vector<4x1xf32>,
    } else {
    }
    %c0 = arith.constant 0 : index
    %c0_1 = arith.constant 0 : index
    %c0_2 = arith.constant 0 : index
    %3 = vector.load %arg1[%c0, %c0_1, %c0_2] : memref<2x4x256xf32, #tpu.memory_space<vmem>>, vector<2x4x256xf32>
    %cst = arith.constant dense<0.000000e+00> : vector<4x256xf32>
    %4 = vector.multi_reduction <add>, %3, %cst [0] : vector<2x4x256xf32> to vector<4x256xf32>
    %5 = arith.mulf %3, %3 : vector<2x4x256xf32>
    %cst_3 = arith.constant dense<0.000000e+00> : vector<4x256xf32>
    %6 = vector.multi_reduction <add>, %5, %cst_3 [0] : vector<2x4x256xf32> to vector<4x256xf32>
    %c0_4 = arith.constant 0 : index
    %c0_5 = arith.constant 0 : index
    %7 = vector.load %arg2[%c0_4, %c0_5] : memref<4x1xf32, #tpu.memory_space<vmem>>, vector<4x1xf32>
    %cst_6 = arith.constant dense<0.000000e+00> : vector<4xf32>
    %8 = vector.multi_reduction <add>, %4, %cst_6 [1] : vector<4x256xf32> to vector<4xf32>
    %9 = vector.shape_cast %8 : vector<4xf32> to vector<4x1xf32>
    %10 = arith.addf %7, %9 : vector<4x1xf32>
    %c0_7 = arith.constant 0 : index
    %c0_8 = arith.constant 0 : index
    %11 = vector.load %arg2[%c0_7, %c0_8] : memref<4x1xf32, #tpu.memory_space<vmem>>, vector<4x1xf32>
    tpu.vector_store %arg2[%c0_7, %c0_8], %10 {strides = array<i32>} : memref<4x1xf32, #tpu.memory_space<vmem>>, vector<4x1xf32>,
    %c0_9 = arith.constant 0 : index
    %c0_10 = arith.constant 0 : index
    %12 = vector.load %arg3[%c0_9, %c0_10] : memref<4x1xf32, #tpu.memory_space<vmem>>, vector<4x1xf32>
    %cst_11 = arith.constant dense<0.000000e+00> : vector<4xf32>
    %13 = vector.multi_reduction <add>, %6, %cst_11 [1] : vector<4x256xf32> to vector<4xf32>
    %14 = vector.shape_cast %13 : vector<4xf32> to vector<4x1xf32>
    %15 = arith.addf %12, %14 : vector<4x1xf32>
    %c0_12 = arith.constant 0 : index
    %c0_13 = arith.constant 0 : index
    %16 = vector.load %arg3[%c0_12, %c0_13] : memref<4x1xf32, #tpu.memory_space<vmem>>, vector<4x1xf32>
    tpu.vector_store %arg3[%c0_12, %c0_13], %15 {strides = array<i32>} : memref<4x1xf32, #tpu.memory_space<vmem>>, vector<4x1xf32>,
    return
  }
  func.func @transform_0(%arg0: i32) -> (i32, i32, i32) {
    %c0_i32 = arith.constant 0 : i32
    %c0_i32_0 = arith.constant 0 : i32
    %c0_i32_1 = arith.constant 0 : i32
    return %c0_i32, %c0_i32_0, %arg0 : i32, i32, i32
  }
  func.func @transform_1(%arg0: i32) -> (i32, i32) {
    %c0_i32 = arith.constant 0 : i32
    %c0_i32_0 = arith.constant 0 : i32
    %c0_i32_1 = arith.constant 0 : i32
    return %c0_i32, %c0_i32_0 : i32, i32
  }
  func.func @transform_2(%arg0: i32) -> (i32, i32) {
    %c0_i32 = arith.constant 0 : i32
    %c0_i32_0 = arith.constant 0 : i32
    %c0_i32_1 = arith.constant 0 : i32
    return %c0_i32, %c0_i32_0 : i32, i32
  }
}

</mosaic_0001>

<llo_original>
// kernel: _stats_3d.1
$region0: #{_stats_3d.1}
  #allocation0 [shape = 'u32[]', space=smem, size = 0x4, offset = 0x4, fixed_abs, tag = 'smem constant byte address 0x4 - core index']
  #allocation1 [shape = 'u32[72,128]{1,0:T(1,128)}', space=vmem, size = 0x9000, scoped, tag = 'internal scratch']
  %s0 = inlined_call_operand.hbm [shape: f32[2,4,256], index: 0, kind: input, shape index: {}]
  %s1 = inlined_call_operand.vmem [shape: f32[4,1], index: 1, kind: output, shape index: {0}]
  %s2 = inlined_call_operand.vmem [shape: f32[4,1], index: 2, kind: output, shape index: {1}]
  %3 = xla_tuple %s1, %s2
  %s4 = sld [smem:[#allocation0]]
  $region30: #{_stats_3d.1} parent=0
    _
  %s6 = ssub.s32 1, %s4
  %s7 = scalar_select 0, %s6, %s4
  $region1: #{_stats_3d.1} parent=0
    #allocation2 [shape = 'u8[8192]{0}', space=vmem, size = 0x2000, scoped, tag = 'input window, operand 0, single buffered']
    #allocation3 [shape = 's32[1]{0}', space=sflag, size = 0x4, scoped, tag = 'scoped memory for _stats_3d.1']
    %8 = vsyncpa [#allocation3], 0
    // Predicated region
    $region2: #{_stats_3d.1} parent=1 // pred_check
      _
    $region3: #{_stats_3d.1} parent=1 // pred_check_branch
      %10 = sbr.rel (0) target = $region5
    $region4: #{_stats_3d.1} parent=1 // pred_region
      %12 = vsyncadd [#allocation3], 0
      %s13 = sshll.u32 %s0, 4
      %s14 = int_to_ptr.hbm [resolvable:$true] %s13
      %s15 = sshll.u32 [#allocation2], 4
      %s16 = int_to_ptr.vmem [resolvable:$true] %s15
      %21 = dma.hbm_to_vmem [thread:$0]  %s14, 256, %s16, [#allocation3], 128, 128, 8
    $region5: #{_stats_3d.1} parent=1 // pred_fallthru
      _
    // Predicated region
    $region6: #{_stats_3d.1} parent=1 // pred_check
      _
    $region7: #{_stats_3d.1} parent=1 // pred_check_branch
      %23 = sbr.rel (0) target = $region9
    $region8: #{_stats_3d.1} parent=1 // pred_region
      %25 = dma.done [#allocation3], 256
    $region9: #{_stats_3d.1} parent=1 // pred_fallthru
      _
    %p26 = scmp.eq.s32.totalorder 0, 0
    // Predicated region
    $region10: #{_stats_3d.1} parent=1 // pred_check
      %p27 = pneg %p26
    $region11: #{_stats_3d.1} parent=1 // pred_check_branch
      %29 = sbr.rel (%p27) target = $region13
    $region12: #{_stats_3d.1} parent=1 // pred_region
      %vm30 = vcmask 3072
      %31 = vst.msk [vmem:[%s1] sm:$0xf] %vm30, 0.0
      %32 = vst.msk [vmem:[%s2] sm:$0xf] %vm30, 0.0
    $region13: #{_stats_3d.1} parent=1 // pred_fallthru
      _
    %v33 = vld [vmem:[#allocation2] sm:$0xff]
    %v34 = vld [vmem:[#allocation2 + $0x8] sm:$0xff]
    %37 = vst [vmem:[#allocation1] ss:$2 sm:$0xff] %v33
    %v38 = vld.sshfl [vmem:[#allocation1] sm:$0xff pattern:$0x75316420]
    %v39 = vld.sshfl [vmem:[#allocation1 + $0x8] sm:$0xff pattern:$0x75316420]
    %s40 = scalar_lea.vmem [#allocation1], 16
    %41 = vst [vmem:[%s40] ss:$2 sm:$0xff] %v34
    %v42 = vld.sshfl [vmem:[#allocation1 + $0x10] sm:$0xff pattern:$0x75316420]
    %v43 = vld.sshfl [vmem:[#allocation1 + $0x18] sm:$0xff pattern:$0x75316420]
    %vm48 = vcmask 1043456
    %v49 = vsel %vm48, %v38, 0.0
    %v50 = vsel %vm48, %v42, 0.0
    %v51 = vadd.f32 %v49, %v50
    %v52 = vsel %vm48, %v39, 0.0
    %v53 = vsel %vm48, %v43, 0.0
    %v54 = vadd.f32 %v52, %v53
    %v55 = vmul.f32 %v33, %v33
    %v56 = vmul.f32 %v34, %v34
    %59 = vst [vmem:[#allocation1] ss:$2 sm:$0xff] %v55
    %v60 = vld.sshfl [vmem:[#allocation1] sm:$0xff pattern:$0x75316420]
    %v61 = vld.sshfl [vmem:[#allocation1 + $0x8] sm:$0xff pattern:$0x75316420]
    %s62 = scalar_lea.vmem [#allocation1], 16
    %63 = vst [vmem:[%s62] ss:$2 sm:$0xff] %v56
    %v64 = vld.sshfl [vmem:[#allocation1 + $0x10] sm:$0xff pattern:$0x75316420]
    %v65 = vld.sshfl [vmem:[#allocation1 + $0x18] sm:$0xff pattern:$0x75316420]
    %v70 = vsel %vm48, %v60, 0.0
    %v71 = vsel %vm48, %v64, 0.0
    %v72 = vadd.f32 %v70, %v71
    %v73 = vsel %vm48, %v61, 0.0
    %v74 = vsel %vm48, %v65, 0.0
    %v75 = vadd.f32 %v73, %v74
    %v76 = vld [vmem:[%s1] sm:$0xf]
    %v77 = vsel %vm48, %v51, 0.0
    %v78 = vsel %vm48, %v54, 0.0
    %v79 = vadd.f32 %v77, %v78
    %80 = vadd.xlane.f32.xlu0 %v79
    %v81 = vpop.xlane.xlu0 %80
    %v82 = vadd.f32 %v76, %v81
    %vm83 = vcmask 3072
    %84 = vst.msk [vmem:[%s1] sm:$0xf] %vm83, %v82
    %v85 = vld [vmem:[%s2] sm:$0xf]
    %v86 = vsel %vm48, %v72, 0.0
    %v87 = vsel %vm48, %v75, 0.0
    %v88 = vadd.f32 %v86, %v87
    %89 = vadd.xlane.f32.xlu0 %v88
    %v90 = vpop.xlane.xlu0 %89
    %v91 = vadd.f32 %v85, %v90
    %92 = vst.msk [vmem:[%s2] sm:$0xf] %vm83, %v91
    // Predicated region
    $region14: #{_stats_3d.1} parent=1 // pred_check
      _
    $region15: #{_stats_3d.1} parent=1 // pred_check_branch
      %94 = sbr.rel (0) target = $region17
    $region16: #{_stats_3d.1} parent=1 // pred_region
      _
    $region17: #{_stats_3d.1} parent=1 // pred_fallthru
      _
    // Predicated region
    $region18: #{_stats_3d.1} parent=1 // pred_check
      _
    $region19: #{_stats_3d.1} parent=1 // pred_check_branch
      %96 = sbr.rel (0) target = $region21
    $region20: #{_stats_3d.1} parent=1 // pred_region
      _
    $region21: #{_stats_3d.1} parent=1 // pred_fallthru
      _
    // Predicated region
    $region22: #{_stats_3d.1} parent=1 // pred_check
      _
    $region23: #{_stats_3d.1} parent=1 // pred_check_branch
      %98 = sbr.rel (0) target = $region25
    $region24: #{_stats_3d.1} parent=1 // pred_region
      _
    $region25: #{_stats_3d.1} parent=1 // pred_fallthru
      _
    // Predicated region
    $region26: #{_stats_3d.1} parent=1 // pred_check
      _
    $region27: #{_stats_3d.1} parent=1 // pred_check_branch
      %100 = sbr.rel (0) target = $region29
    $region28: #{_stats_3d.1} parent=1 // pred_region
      _
    $region29: #{_stats_3d.1} parent=1 // pred_fallthru
      _
    %101 = vsyncpa [#allocation3], 1

</llo_original>
